<compile_context>
chip_gen: v5e
topology: v5e:2x2
jax: 0.10.0
libtpu: 0.0.40
codegen_flags: <defaults>
</compile_context>

<pallas_src>
import functools

import jax
import jax.numpy as jnp
from jax import lax
from jax.experimental import pallas as pl
from jax.experimental.pallas import tpu as pltpu


def residual_stack_kernel(x_ref, w1m_ref, w10_ref, w1p_ref, w2_ref, o_ref, *,
                          num_layers, valid_len, has_pad, matmul_dtype):
    # x_ref / o_ref : (bt, C, Lp)
    # w1m/w10/w1p   : (NL, R, C)   taps k=0,1,2 of the 3-wide conv
    # w2            : (NL, C, R)   1x1 conv
    x = x_ref[...].astype(jnp.float32)                      # (bt, C, Lp)
    bt, C, Lp = x.shape
    R = w1m_ref.shape[1]

    # Hoisted once: lane t carries real data iff t < valid_len.  Only needed
    # when the lane axis is padded (prevents padded-lane garbage in x from
    # leaking back into valid lanes through the conv shift).
    if has_pad:
        valid = lax.broadcasted_iota(jnp.int32, (1, 1, Lp), 2) < valid_len
    else:
        valid = None

    zero_r = jnp.zeros((bt, R, 1), jnp.float32)

    def layer_step(x, w1m, w10, w1p, w2):
        h = jnp.tanh(x)                                     # (bt, C, Lp), f32
        if valid is not None:
            h = jnp.where(valid, h, 0.0)
        hm = h.astype(matmul_dtype)

        # Tiny per-layer weights broadcast over the batch dim of the block.
        w1m_b = jnp.broadcast_to(w1m, (bt, R, C))
        w10_b = jnp.broadcast_to(w10, (bt, R, C))
        w1p_b = jnp.broadcast_to(w1p, (bt, R, C))

        # One canonical batched matmul per conv tap (f32 accumulation).
        s_m = jnp.einsum('brc,bcl->brl', w1m_b, hm,
                         preferred_element_type=jnp.float32)
        s_0 = jnp.einsum('brc,bcl->brl', w10_b, hm,
                         preferred_element_type=jnp.float32)
        s_p = jnp.einsum('brc,bcl->brl', w1p_b, hm,
                         preferred_element_type=jnp.float32)

        # Assemble the k=3 conv by shifting the (bt, R, Lp) RESULTS:
        #   y[t] = s_0[t] + s_m[t-1] + s_p[t+1],  with zero fill at the edges.
        y = s_0
        y = y + jnp.concatenate([zero_r, s_m[:, :, :Lp - 1]], axis=2)
        y = y + jnp.concatenate([s_p[:, :, 1:], zero_r], axis=2)

        h2 = jnp.tanh(y).astype(matmul_dtype)               # (bt, R, Lp)
        w2_b = jnp.broadcast_to(w2, (bt, C, R))
        return x + jnp.einsum('bcr,brl->bcl', w2_b, h2,
                              preferred_element_type=jnp.float32)

    if num_layers <= 4:
        # Small stacks: static unroll (zero control-flow overhead).
        for layer in range(num_layers):
            x = layer_step(x,
                           w1m_ref[layer].astype(matmul_dtype),
                           w10_ref[layer].astype(matmul_dtype),
                           w1p_ref[layer].astype(matmul_dtype),
                           w2_ref[layer].astype(matmul_dtype))
    else:
        # Deep stacks: fori_loop bounds live ranges / code size.
        def body(layer, xc):
            return layer_step(xc,
                              w1m_ref[layer].astype(matmul_dtype),
                              w10_ref[layer].astype(matmul_dtype),
                              w1p_ref[layer].astype(matmul_dtype),
                              w2_ref[layer].astype(matmul_dtype))
        x = lax.fori_loop(0, num_layers, body, x)

    o_ref[...] = jnp.tanh(x).astype(o_ref.dtype)


def residual_stack(x, w1, w2, *, matmul_dtype=jnp.float32,
                   target_block_bytes=1 << 20):
    """x: (B, C, L).  w1: (NL, R, C, 3).  w2: (NL, C, R, 1).

    matmul_dtype: set to jnp.bfloat16 on v6e/v7x for ~2x MXU rate (relax the
    test tolerance accordingly); f32 elementwise/residual math is kept either
    way (v5e-safe).
    """
    B, C, L = x.shape
    NL, R = w1.shape[0], w1.shape[1]

    # Lane padding: only up to the next multiple of 128 (Lp = L when already
    # aligned).  Conv zero padding is handled with explicit zero columns, so
    # no extra gap lane is required.
    Lp = L if L % 128 == 0 else (L // 128 + 1) * 128
    # TODO(synk): for very small L, several batch elements could share a single
    # 128-lane tile to cut padding waste further; for very long single-batch L
    # the lane axis would need in-block tiling with 1-lane halos.

    elem = jnp.dtype(x.dtype).itemsize
    row_bytes = C * Lp * elem

    # Batch elements per grid step: big enough to amortize the ~0.35us per-step
    # overhead and issue efficient DMAs, capped so the per-step working set
    # (in/out double buffers + ~6 live block-sized temporaries) stays well
    # inside v7x's 64 MiB VMEM, and capped to keep >=2 grid steps (megacore).
    bt = max(1, min(B, target_block_bytes // max(row_bytes, 1)))
    bt = min(bt, max(1, (4 << 20) // max(row_bytes, 1)))
    if B >= 2:
        bt = min(bt, pl.cdiv(B, 2))
    grid_n = pl.cdiv(B, bt)
    Bp = grid_n * bt                       # pad the batch tail with zeros

    xp = x
    if Lp != L or Bp != B:
        xp = jnp.pad(x, ((0, Bp - B), (0, 0), (0, Lp - L)))

    # Split the k=3 weight into its three taps (cheap host-side slices).
    w1m, w10, w1p = w1[:, :, :, 0], w1[:, :, :, 1], w1[:, :, :, 2]  # (NL,R,C)
    w2m = w2[:, :, :, 0]                                            # (NL,C,R)

    # Explicit VMEM budget (review: don't rely on the default scoped limit).
    block_bytes = bt * row_bytes
    weight_bytes = (3 * NL * R * C + NL * C * R) * 4
    vmem_est = 12 * block_bytes + 4 * weight_bytes + (2 << 20)
    vmem_limit = int(min(48 << 20, max(32 << 20, vmem_est)))

    kernel = functools.partial(
        residual_stack_kernel, num_layers=NL, valid_len=L,
        has_pad=(Lp != L), matmul_dtype=matmul_dtype)

    out_p = pl.pallas_call(
        kernel,
        out_shape=jax.ShapeDtypeStruct((Bp, C, Lp), x.dtype),
        grid_spec=pltpu.PrefetchScalarGridSpec(
            num_scalar_prefetch=0,
            grid=(grid_n,),
            in_specs=[
                pl.BlockSpec((bt, C, Lp), lambda b: (b, 0, 0)),
                pl.BlockSpec((NL, R, C), lambda b: (0, 0, 0)),
                pl.BlockSpec((NL, R, C), lambda b: (0, 0, 0)),
                pl.BlockSpec((NL, R, C), lambda b: (0, 0, 0)),
                pl.BlockSpec((NL, C, R), lambda b: (0, 0, 0)),
            ],
            out_specs=pl.BlockSpec((bt, C, Lp), lambda b: (b, 0, 0)),
        ),
        compiler_params=pltpu.CompilerParams(
            dimension_semantics=("parallel",),
            vmem_limit_bytes=vmem_limit),
    )(xp, w1m, w10, w1p, w2m)

    if Lp != L or Bp != B:
        out_p = out_p[:B, :, :L]
    return out_p


def residual_stack_ref(x, w1, w2):
    """Pure-JAX reference (NCL, same semantics as the PyTorch module)."""
    NL = w1.shape[0]
    L = x.shape[2]
    for layer in range(NL):
        h = jnp.tanh(x)                                     # (B, C, L)
        hp = jnp.pad(h, ((0, 0), (0, 0), (1, 1)))
        # y[b, r, t] = sum_{c,k} w1[layer, r, c, k] * hp[b, c, t+k]
        y = sum(jnp.einsum("rc,bcl->brl", w1[layer, :, :, k],
                           hp[:, :, k:k + L]) for k in range(3))
        h2 = jnp.tanh(y)
        x = x + jnp.einsum("cr,brl->bcl", w2[layer, :, :, 0], h2)
    return jnp.tanh(x)


if __name__ == "__main__":
    # Small shapes consistent with the module: in_channels == num_hiddens.
    B = 2
    num_hiddens = 32          # = in_channels (required by the residual add)
    num_residual_hiddens = 8
    num_residual_layers = 2
    L = 16

    key = jax.random.PRNGKey(0)
    kx, k1, k2 = jax.random.split(key, 3)
    x = jax.random.normal(kx, (B, num_hiddens, L), dtype=jnp.float32)
    # Conv1d(k=3) weight: (out=R, in=C, 3); Conv1d(k=1) weight: (out=C, in=R, 1)
    w1 = 0.1 * jax.random.normal(
        k1, (num_residual_layers, num_residual_hiddens, num_hiddens, 3),
        dtype=jnp.float32)
    w2 = 0.1 * jax.random.normal(
        k2, (num_residual_layers, num_hiddens, num_residual_hiddens, 1),
        dtype=jnp.float32)

    out = residual_stack(x, w1, w2)
    out = jax.block_until_ready(out)

    ref = residual_stack_ref(x, w1, w2)
    assert out.shape == ref.shape and out.dtype == ref.dtype
    assert jnp.allclose(out, ref, atol=1e-5, rtol=1e-5), "mismatch vs reference"

    print("KERNEL_OK")
</pallas_src>

<mosaic_0001>
module attributes {stable_mosaic.version = 11 : i64} {
  func.func @residual_stack_kernel(%arg0: i32, %arg1: memref<1x32x128xf32, #tpu.memory_space<vmem>>, %arg2: memref<2x8x32xf32, #tpu.memory_space<vmem>>, %arg3: memref<2x8x32xf32, #tpu.memory_space<vmem>>, %arg4: memref<2x8x32xf32, #tpu.memory_space<vmem>>, %arg5: memref<2x32x8xf32, #tpu.memory_space<vmem>>, %arg6: memref<1x32x128xf32, #tpu.memory_space<vmem>>) attributes {dimension_semantics = [#tpu.dimension_semantics<parallel>], iteration_bounds = array<i64: 2>, scalar_prefetch = 0 : i64, scratch_operands = 0 : i64, tpu.core_type = #tpu.core_type<tc>, window_params = [{transform_indices = @transform_0, window_bounds = array<i64: 1, 32, 128>}, {pipeline_mode = #tpu.pipeline_mode<synchronous>, transform_indices = @transform_1, window_bounds = array<i64: 2, 8, 32>}, {pipeline_mode = #tpu.pipeline_mode<synchronous>, transform_indices = @transform_2, window_bounds = array<i64: 2, 8, 32>}, {pipeline_mode = #tpu.pipeline_mode<synchronous>, transform_indices = @transform_3, window_bounds = array<i64: 2, 8, 32>}, {pipeline_mode = #tpu.pipeline_mode<synchronous>, transform_indices = @transform_4, window_bounds = array<i64: 2, 32, 8>}, {transform_indices = @transform_5, window_bounds = array<i64: 1, 32, 128>}]} {
    %c0 = arith.constant 0 : index
    %c0_0 = arith.constant 0 : index
    %c0_1 = arith.constant 0 : index
    %0 = vector.load %arg1[%c0, %c0_0, %c0_1] : memref<1x32x128xf32, #tpu.memory_space<vmem>>, vector<1x32x128xf32>
    %1 = tpu.iota {dimensions = array<i32: 2>} : vector<1x1x128xi32>
    %c16_i32 = arith.constant 16 : i32
    %2 = vector.broadcast %c16_i32 : i32 to vector<1x1x128xi32>
    %3 = arith.cmpi slt, %1, %2 : vector<1x1x128xi32>
    %cst = arith.constant 0.000000e+00 : f32
    %4 = vector.broadcast %cst : f32 to vector<1x8x1xf32>
    %c0_2 = arith.constant 0 : index
    %c0_3 = arith.constant 0 : index
    %c0_4 = arith.constant 0 : index
    %5 = vector.load %arg2[%c0_2, %c0_3, %c0_4] : memref<2x8x32xf32, #tpu.memory_space<vmem>>, vector<1x8x32xf32>
    %6 = vector.shape_cast %5 : vector<1x8x32xf32> to vector<8x32xf32>
    %c0_5 = arith.constant 0 : index
    %c0_6 = arith.constant 0 : index
    %c0_7 = arith.constant 0 : index
    %7 = vector.load %arg3[%c0_5, %c0_6, %c0_7] : memref<2x8x32xf32, #tpu.memory_space<vmem>>, vector<1x8x32xf32>
    %8 = vector.shape_cast %7 : vector<1x8x32xf32> to vector<8x32xf32>
    %c0_8 = arith.constant 0 : index
    %c0_9 = arith.constant 0 : index
    %c0_10 = arith.constant 0 : index
    %9 = vector.load %arg4[%c0_8, %c0_9, %c0_10] : memref<2x8x32xf32, #tpu.memory_space<vmem>>, vector<1x8x32xf32>
    %10 = vector.shape_cast %9 : vector<1x8x32xf32> to vector<8x32xf32>
    %c0_11 = arith.constant 0 : index
    %c0_12 = arith.constant 0 : index
    %c0_13 = arith.constant 0 : index
    %11 = vector.load %arg5[%c0_11, %c0_12, %c0_13] : memref<2x32x8xf32, #tpu.memory_space<vmem>>, vector<1x32x8xf32>
    %12 = vector.shape_cast %11 : vector<1x32x8xf32> to vector<32x8xf32>
    %13 = math.tanh %0 : vector<1x32x128xf32>
    %cst_14 = arith.constant 0.000000e+00 : f32
    %14 = vector.shape_cast %3 : vector<1x1x128xi1> to vector<1x1x128xi1>
    %15 = vector.broadcast %14 : vector<1x1x128xi1> to vector<1x32x128xi1>
    %16 = vector.broadcast %cst_14 : f32 to vector<1x32x128xf32>
    %17 = arith.select %15, %13, %16 : vector<1x32x128xi1>, vector<1x32x128xf32>
    %18 = vector.shape_cast %6 : vector<8x32xf32> to vector<1x8x32xf32>
    %19 = vector.shape_cast %8 : vector<8x32xf32> to vector<1x8x32xf32>
    %20 = vector.shape_cast %10 : vector<8x32xf32> to vector<1x8x32xf32>
    "tpu.trace_start"() <{level = 10 : i32, message = "brc,bcl->brl"}> : () -> ()
    %cst_15 = arith.constant dense<0.000000e+00> : vector<1x8x128xf32>
    %21 = tpu.matmul %18, %17, %cst_15 {dimension_numbers = #tpu.dot_dimension_numbers<[2], [1], [1], [2], [0, 0, 0, 1, 1, 2], [0], [0]>} : vector<1x8x32xf32>, vector<1x32x128xf32>, vector<1x8x128xf32> -> vector<1x8x128xf32>
    %cst_16 = arith.constant dense<0.000000e+00> : vector<1x8x128xf32>
    %22 = tpu.matmul %19, %17, %cst_16 {dimension_numbers = #tpu.dot_dimension_numbers<[2], [1], [1], [2], [0, 0, 0, 1, 1, 2], [0], [0]>} : vector<1x8x32xf32>, vector<1x32x128xf32>, vector<1x8x128xf32> -> vector<1x8x128xf32>
    %cst_17 = arith.constant dense<0.000000e+00> : vector<1x8x128xf32>
    %23 = tpu.matmul %20, %17, %cst_17 {dimension_numbers = #tpu.dot_dimension_numbers<[2], [1], [1], [2], [0, 0, 0, 1, 1, 2], [0], [0]>} : vector<1x8x32xf32>, vector<1x32x128xf32>, vector<1x8x128xf32> -> vector<1x8x128xf32>
    "tpu.trace_stop"() : () -> ()
    %24 = vector.extract_strided_slice %21 {offsets = [0, 0, 0], sizes = [1, 8, 127], strides = [1, 1, 1]} : vector<1x8x128xf32> to vector<1x8x127xf32>
    %25 = tpu.concatenate %4, %24 in 2 : vector<1x8x1xf32>, vector<1x8x127xf32> -> vector<1x8x128xf32>
    %26 = arith.addf %22, %25 : vector<1x8x128xf32>
    %27 = vector.extract_strided_slice %23 {offsets = [0, 0, 1], sizes = [1, 8, 127], strides = [1, 1, 1]} : vector<1x8x128xf32> to vector<1x8x127xf32>
    %28 = tpu.concatenate %27, %4 in 2 : vector<1x8x127xf32>, vector<1x8x1xf32> -> vector<1x8x128xf32>
    %29 = arith.addf %26, %28 : vector<1x8x128xf32>
    %30 = math.tanh %29 : vector<1x8x128xf32>
    %31 = vector.shape_cast %12 : vector<32x8xf32> to vector<1x32x8xf32>
    "tpu.trace_start"() <{level = 10 : i32, message = "bcr,brl->bcl"}> : () -> ()
    %cst_18 = arith.constant dense<0.000000e+00> : vector<1x32x128xf32>
    %32 = tpu.matmul %31, %30, %cst_18 {dimension_numbers = #tpu.dot_dimension_numbers<[2], [1], [1], [2], [0, 0, 0, 1, 1, 2], [0], [0]>} : vector<1x32x8xf32>, vector<1x8x128xf32>, vector<1x32x128xf32> -> vector<1x32x128xf32>
    "tpu.trace_stop"() : () -> ()
    %33 = arith.addf %0, %32 : vector<1x32x128xf32>
    %c1 = arith.constant 1 : index
    %c0_19 = arith.constant 0 : index
    %c0_20 = arith.constant 0 : index
    %34 = vector.load %arg2[%c1, %c0_19, %c0_20] : memref<2x8x32xf32, #tpu.memory_space<vmem>>, vector<1x8x32xf32>
    %35 = vector.shape_cast %34 : vector<1x8x32xf32> to vector<8x32xf32>
    %c1_21 = arith.constant 1 : index
    %c0_22 = arith.constant 0 : index
    %c0_23 = arith.constant 0 : index
    %36 = vector.load %arg3[%c1_21, %c0_22, %c0_23] : memref<2x8x32xf32, #tpu.memory_space<vmem>>, vector<1x8x32xf32>
    %37 = vector.shape_cast %36 : vector<1x8x32xf32> to vector<8x32xf32>
    %c1_24 = arith.constant 1 : index
    %c0_25 = arith.constant 0 : index
    %c0_26 = arith.constant 0 : index
    %38 = vector.load %arg4[%c1_24, %c0_25, %c0_26] : memref<2x8x32xf32, #tpu.memory_space<vmem>>, vector<1x8x32xf32>
    %39 = vector.shape_cast %38 : vector<1x8x32xf32> to vector<8x32xf32>
    %c1_27 = arith.constant 1 : index
    %c0_28 = arith.constant 0 : index
    %c0_29 = arith.constant 0 : index
    %40 = vector.load %arg5[%c1_27, %c0_28, %c0_29] : memref<2x32x8xf32, #tpu.memory_space<vmem>>, vector<1x32x8xf32>
    %41 = vector.shape_cast %40 : vector<1x32x8xf32> to vector<32x8xf32>
    %42 = math.tanh %33 : vector<1x32x128xf32>
    %cst_30 = arith.constant 0.000000e+00 : f32
    %43 = vector.shape_cast %3 : vector<1x1x128xi1> to vector<1x1x128xi1>
    %44 = vector.broadcast %43 : vector<1x1x128xi1> to vector<1x32x128xi1>
    %45 = vector.broadcast %cst_30 : f32 to vector<1x32x128xf32>
    %46 = arith.select %44, %42, %45 : vector<1x32x128xi1>, vector<1x32x128xf32>
    %47 = vector.shape_cast %35 : vector<8x32xf32> to vector<1x8x32xf32>
    %48 = vector.shape_cast %37 : vector<8x32xf32> to vector<1x8x32xf32>
    %49 = vector.shape_cast %39 : vector<8x32xf32> to vector<1x8x32xf32>
    "tpu.trace_start"() <{level = 10 : i32, message = "brc,bcl->brl"}> : () -> ()
    %cst_31 = arith.constant dense<0.000000e+00> : vector<1x8x128xf32>
    %50 = tpu.matmul %47, %46, %cst_31 {dimension_numbers = #tpu.dot_dimension_numbers<[2], [1], [1], [2], [0, 0, 0, 1, 1, 2], [0], [0]>} : vector<1x8x32xf32>, vector<1x32x128xf32>, vector<1x8x128xf32> -> vector<1x8x128xf32>
    %cst_32 = arith.constant dense<0.000000e+00> : vector<1x8x128xf32>
    %51 = tpu.matmul %48, %46, %cst_32 {dimension_numbers = #tpu.dot_dimension_numbers<[2], [1], [1], [2], [0, 0, 0, 1, 1, 2], [0], [0]>} : vector<1x8x32xf32>, vector<1x32x128xf32>, vector<1x8x128xf32> -> vector<1x8x128xf32>
    %cst_33 = arith.constant dense<0.000000e+00> : vector<1x8x128xf32>
    %52 = tpu.matmul %49, %46, %cst_33 {dimension_numbers = #tpu.dot_dimension_numbers<[2], [1], [1], [2], [0, 0, 0, 1, 1, 2], [0], [0]>} : vector<1x8x32xf32>, vector<1x32x128xf32>, vector<1x8x128xf32> -> vector<1x8x128xf32>
    "tpu.trace_stop"() : () -> ()
    %53 = vector.extract_strided_slice %50 {offsets = [0, 0, 0], sizes = [1, 8, 127], strides = [1, 1, 1]} : vector<1x8x128xf32> to vector<1x8x127xf32>
    %54 = tpu.concatenate %4, %53 in 2 : vector<1x8x1xf32>, vector<1x8x127xf32> -> vector<1x8x128xf32>
    %55 = arith.addf %51, %54 : vector<1x8x128xf32>
    %56 = vector.extract_strided_slice %52 {offsets = [0, 0, 1], sizes = [1, 8, 127], strides = [1, 1, 1]} : vector<1x8x128xf32> to vector<1x8x127xf32>
    %57 = tpu.concatenate %56, %4 in 2 : vector<1x8x127xf32>, vector<1x8x1xf32> -> vector<1x8x128xf32>
    %58 = arith.addf %55, %57 : vector<1x8x128xf32>
    %59 = math.tanh %58 : vector<1x8x128xf32>
    %60 = vector.shape_cast %41 : vector<32x8xf32> to vector<1x32x8xf32>
    "tpu.trace_start"() <{level = 10 : i32, message = "bcr,brl->bcl"}> : () -> ()
    %cst_34 = arith.constant dense<0.000000e+00> : vector<1x32x128xf32>
    %61 = tpu.matmul %60, %59, %cst_34 {dimension_numbers = #tpu.dot_dimension_numbers<[2], [1], [1], [2], [0, 0, 0, 1, 1, 2], [0], [0]>} : vector<1x32x8xf32>, vector<1x8x128xf32>, vector<1x32x128xf32> -> vector<1x32x128xf32>
    "tpu.trace_stop"() : () -> ()
    %62 = arith.addf %33, %61 : vector<1x32x128xf32>
    %63 = math.tanh %62 : vector<1x32x128xf32>
    %c0_35 = arith.constant 0 : index
    %c0_36 = arith.constant 0 : index
    %c0_37 = arith.constant 0 : index
    %64 = vector.load %arg6[%c0_35, %c0_36, %c0_37] : memref<1x32x128xf32, #tpu.memory_space<vmem>>, vector<1x32x128xf32>
    tpu.vector_store %arg6[%c0_35, %c0_36, %c0_37], %63 {strides = array<i32>} : memref<1x32x128xf32, #tpu.memory_space<vmem>>, vector<1x32x128xf32>,
    return
  }
  func.func @transform_0(%arg0: i32) -> (i32, i32, i32) {
    %c0_i32 = arith.constant 0 : i32
    %c0_i32_0 = arith.constant 0 : i32
    %c0_i32_1 = arith.constant 0 : i32
    return %arg0, %c0_i32, %c0_i32_0 : i32, i32, i32
  }
  func.func @transform_1(%arg0: i32) -> (i32, i32, i32) {
    %c0_i32 = arith.constant 0 : i32
    %c0_i32_0 = arith.constant 0 : i32
    %c0_i32_1 = arith.constant 0 : i32
    %c0_i32_2 = arith.constant 0 : i32
    return %c0_i32, %c0_i32_0, %c0_i32_1 : i32, i32, i32
  }
  func.func @transform_2(%arg0: i32) -> (i32, i32, i32) {
    %c0_i32 = arith.constant 0 : i32
    %c0_i32_0 = arith.constant 0 : i32
    %c0_i32_1 = arith.constant 0 : i32
    %c0_i32_2 = arith.constant 0 : i32
    return %c0_i32, %c0_i32_0, %c0_i32_1 : i32, i32, i32
  }
  func.func @transform_3(%arg0: i32) -> (i32, i32, i32) {
    %c0_i32 = arith.constant 0 : i32
    %c0_i32_0 = arith.constant 0 : i32
    %c0_i32_1 = arith.constant 0 : i32
    %c0_i32_2 = arith.constant 0 : i32
    return %c0_i32, %c0_i32_0, %c0_i32_1 : i32, i32, i32
  }
  func.func @transform_4(%arg0: i32) -> (i32, i32, i32) {
    %c0_i32 = arith.constant 0 : i32
    %c0_i32_0 = arith.constant 0 : i32
    %c0_i32_1 = arith.constant 0 : i32
    %c0_i32_2 = arith.constant 0 : i32
    return %c0_i32, %c0_i32_0, %c0_i32_1 : i32, i32, i32
  }
  func.func @transform_5(%arg0: i32) -> (i32, i32, i32) {
    %c0_i32 = arith.constant 0 : i32
    %c0_i32_0 = arith.constant 0 : i32
    %c0_i32_1 = arith.constant 0 : i32
    return %arg0, %c0_i32, %c0_i32_0 : i32, i32, i32
  }
}

</mosaic_0001>

<llo_original>
// kernel: tpu_custom_call.1
$region0: #{tpu_custom_call.1}
  #allocation0 [shape = 'u32[]', space=smem, size = 0x4, offset = 0x4, fixed_abs, tag = 'smem constant byte address 0x4 - core index']
  #allocation1 [shape = 'u32[72,128]{1,0:T(1,128)}', space=vmem, size = 0x9000, scoped, tag = 'internal scratch']
  %s0 = inlined_call_operand.vmem [shape: f32[2,32,128], index: 0, kind: input, shape index: {}]
  %s1 = inlined_call_operand.vmem [shape: f32[2,8,32], index: 1, kind: input, shape index: {}]
  %s2 = inlined_call_operand.hbm [shape: f32[2,8,32], index: 2, kind: input, shape index: {}]
  %s3 = inlined_call_operand.hbm [shape: f32[2,8,32], index: 3, kind: input, shape index: {}]
  %s4 = inlined_call_operand.vmem [shape: f32[2,32,8], index: 4, kind: input, shape index: {}]
  %s5 = inlined_call_operand.hbm [shape: f32[2,32,128], index: 5, kind: output, shape index: {}]
  %s6 = sld [smem:[#allocation0]]
  $region61: #{tpu_custom_call.1} parent=0
    _
  %s8 = ssub.s32 1, %s6
  %s9 = scalar_select 0, %s8, %s6
  $region1: #{tpu_custom_call.1} parent=0
    #allocation2 [shape = 'u8[8192]{0}', space=vmem, size = 0x2000, scoped, tag = 'input window, operand 2, single buffered']
    #allocation3 [shape = 's32[2]{0}', space=sflag, size = 0x8, scoped, tag = 'scoped memory for tpu_custom_call.1']
    #allocation4 [shape = 's32[2]{0}', space=sflag, size = 0x8, scoped, tag = 'scoped memory for tpu_custom_call.1']
    #allocation5 [shape = 'u8[8192]{0}', space=vmem, size = 0x2000, scoped, tag = 'input window, operand 3, single buffered']
    #allocation6 [shape = 's32[1]{0}', space=sflag, size = 0x4, scoped, tag = 'scoped memory for tpu_custom_call.1']
    #allocation7 [shape = 'u8[32768]{0}', space=vmem, size = 0x8000, scoped, tag = 'output window, operand 0']
    %10 = vsyncpa [#allocation3], 0
    %11 = vsyncpa [#allocation6], 0
    %12 = vsyncpa [#allocation4], 0
    %s13 = scalar_lea.sflag [#allocation4], 1
    %14 = vsyncpa %s13, 0
    loop: start=0, step=1, limit=4
    $region2: #{tpu_custom_call.1} parent=1 // loop_pre_header
      _
    $region3: #{tpu_custom_call.1} parent=1 // loop_header
      %s16 = sphi 0, %s20
      %p17 = scmp.ge.s32.totalorder %s16, 4
      %s26 = sphi 0, %s28
      %s29 = sphi 0, %s26
      %s30 = sphi 0, %s29
      %s46 = sphi 0, %s30
      %s50 = sphi 0, %s50
      %s52 = sphi 0, %s50
      %s53 = sphi 0, %s52
      %s67 = sphi 0, %s53
      %s71 = sphi 0, %s71
      %s73 = sphi 0, %s71
      %s74 = sphi 0, %s73
      %s88 = sphi 0, %s74
      %s92 = sphi 0, %s92
      %s94 = sphi 0, %s92
      %s95 = sphi 0, %s94
      %s109 = sphi 0, %s95
      %s113 = sphi 0, %s113
      %s115 = sphi 0, %s113
      %s116 = sphi 0, %s115
      %s130 = sphi 0, %s116
      %s136 = sphi 0, %s138
      %s139 = sphi 0, %s136
      %s140 = sphi 0, %s139
      %s156 = sphi 0, %s140
    $region4: #{tpu_custom_call.1} parent=1 // loop_header_branch
      %19 = sbr.rel (%p17) target = $region8
    $region5: #{tpu_custom_call.1} parent=1 // loop_body
      %s21 = ssub.s32 %s16, 1
      %s22 = ssub.s32 %s16, 2
      %s23 = sadd.s32 %s16, 1
      %s24 = ssub.s32 %s16, %s23
      %p25 = scmp.eq.s32.totalorder %s24, 0
      %s27 = sadd.s32 %s26, 1
      %s28 = scalar_select %p25, %s26, %s27
      %p31 = pneg %p25
      %p32 = scmp.eq.s32.totalorder %s16, 1
      %p33 = por %p31, %p32
      %p34 = scmp.ne.s32.totalorder %s26, %s29
      %p35 = scmp.eq.s32.totalorder %s16, 0
      %p36 = por %p34, %p35
      %p37 = scmp.ne.s32.totalorder %s26, %s29
      %p38 = scmp.eq.s32.totalorder %s21, 1
      %p39 = por %p37, %p38
      %p40 = scmp.ne.s32.totalorder %s29, %s30
      %p41 = scmp.eq.s32.totalorder %s21, 0
      %p42 = por %p40, %p41
      %p43 = scmp.ne.s32.totalorder %s29, %s30
      %p44 = scmp.eq.s32.totalorder %s22, 1
      %p45 = por %p43, %p44
      %p47 = scmp.ne.s32.totalorder %s30, %s46
      %p48 = scmp.eq.s32.totalorder %s22, 0
      %p49 = por %p47, %p48
      %s51 = sadd.s32 %s50, 1
      %p54 = scmp.eq.s32.totalorder %s16, 1
      %p55 = scmp.ne.s32.totalorder %s50, %s52
      %p56 = scmp.eq.s32.totalorder %s16, 0
      %p57 = por %p55, %p56
      %p58 = scmp.ne.s32.totalorder %s50, %s52
      %p59 = scmp.eq.s32.totalorder %s21, 1
      %p60 = por %p58, %p59
      %p61 = scmp.ne.s32.totalorder %s52, %s53
      %p62 = scmp.eq.s32.totalorder %s21, 0
      %p63 = por %p61, %p62
      %p64 = scmp.ne.s32.totalorder %s52, %s53
      %p65 = scmp.eq.s32.totalorder %s22, 1
      %p66 = por %p64, %p65
      %p68 = scmp.ne.s32.totalorder %s53, %s67
      %p69 = scmp.eq.s32.totalorder %s22, 0
      %p70 = por %p68, %p69
      %s72 = sadd.s32 %s71, 1
      %p75 = scmp.eq.s32.totalorder %s16, 1
      %p76 = scmp.ne.s32.totalorder %s71, %s73
      %p77 = scmp.eq.s32.totalorder %s16, 0
      %p78 = por %p76, %p77
      %p79 = scmp.ne.s32.totalorder %s71, %s73
      %p80 = scmp.eq.s32.totalorder %s21, 1
      %p81 = por %p79, %p80
      %p82 = scmp.ne.s32.totalorder %s73, %s74
      %p83 = scmp.eq.s32.totalorder %s21, 0
      %p84 = por %p82, %p83
      %p85 = scmp.ne.s32.totalorder %s73, %s74
      %p86 = scmp.eq.s32.totalorder %s22, 1
      %p87 = por %p85, %p86
      %p89 = scmp.ne.s32.totalorder %s74, %s88
      %p90 = scmp.eq.s32.totalorder %s22, 0
      %p91 = por %p89, %p90
      %s93 = sadd.s32 %s92, 1
      %p96 = scmp.eq.s32.totalorder %s16, 1
      %p97 = scmp.ne.s32.totalorder %s92, %s94
      %p98 = scmp.eq.s32.totalorder %s16, 0
      %p99 = por %p97, %p98
      %p100 = scmp.ne.s32.totalorder %s92, %s94
      %p101 = scmp.eq.s32.totalorder %s21, 1
      %p102 = por %p100, %p101
      %p103 = scmp.ne.s32.totalorder %s94, %s95
      %p104 = scmp.eq.s32.totalorder %s21, 0
      %p105 = por %p103, %p104
      %p106 = scmp.ne.s32.totalorder %s94, %s95
      %p107 = scmp.eq.s32.totalorder %s22, 1
      %p108 = por %p106, %p107
      %p110 = scmp.ne.s32.totalorder %s95, %s109
      %p111 = scmp.eq.s32.totalorder %s22, 0
      %p112 = por %p110, %p111
      %s114 = sadd.s32 %s113, 1
      %p117 = scmp.eq.s32.totalorder %s16, 1
      %p118 = scmp.ne.s32.totalorder %s113, %s115
      %p119 = scmp.eq.s32.totalorder %s16, 0
      %p120 = por %p118, %p119
      %p121 = scmp.ne.s32.totalorder %s113, %s115
      %p122 = scmp.eq.s32.totalorder %s21, 1
      %p123 = por %p121, %p122
      %p124 = scmp.ne.s32.totalorder %s115, %s116
      %p125 = scmp.eq.s32.totalorder %s21, 0
      %p126 = por %p124, %p125
      %p127 = scmp.ne.s32.totalorder %s115, %s116
      %p128 = scmp.eq.s32.totalorder %s22, 1
      %p129 = por %p127, %p128
      %p131 = scmp.ne.s32.totalorder %s116, %s130
      %p132 = scmp.eq.s32.totalorder %s22, 0
      %p133 = por %p131, %p132
      %s134 = ssub.s32 %s16, %s23
      %p135 = scmp.eq.s32.totalorder %s134, 0
      %s137 = sadd.s32 %s136, 1
      %s138 = scalar_select %p135, %s136, %s137
      %p141 = pneg %p135
      %p142 = scmp.eq.s32.totalorder %s16, 1
      %p143 = por %p141, %p142
      %p144 = scmp.ne.s32.totalorder %s136, %s139
      %p145 = scmp.eq.s32.totalorder %s16, 0
      %p146 = por %p144, %p145
      %p147 = scmp.ne.s32.totalorder %s136, %s139
      %p148 = scmp.eq.s32.totalorder %s21, 1
      %p149 = por %p147, %p148
      %p150 = scmp.ne.s32.totalorder %s139, %s140
      %p151 = scmp.eq.s32.totalorder %s21, 0
      %p152 = por %p150, %p151
      %p153 = scmp.ne.s32.totalorder %s139, %s140
      %p154 = scmp.eq.s32.totalorder %s22, 1
      %p155 = por %p153, %p154
      %p157 = scmp.ne.s32.totalorder %s140, %s156
      %p158 = scmp.eq.s32.totalorder %s22, 0
      %p159 = por %p157, %p158
      %p160 = scmp.le.s32.totalorder 1, %s16
      %p161 = scmp.lt.s32.totalorder %s16, 3
      %p162 = pnand %p160, %p161
      %p163 = pneg %p162
      // Predicated region
      $region9: #{tpu_custom_call.1} parent=5 // pred_check
        _
      $region10: #{tpu_custom_call.1} parent=5 // pred_check_branch
        %165 = sbr.rel (%p162) target = $region12
      $region11: #{tpu_custom_call.1} parent=5 // pred_region
        %s166 = ssub.s32 %s16, 1
        // Predicated region
        $region13: #{tpu_custom_call.1} parent=11 // pred_check
          %p167 = pneg %p63
        $region14: #{tpu_custom_call.1} parent=11 // pred_check_branch
          %169 = sbr.rel (%p167) target = $region16
        $region15: #{tpu_custom_call.1} parent=11 // pred_region
          _
        $region16: #{tpu_custom_call.1} parent=11 // pred_fallthru
          _
        // Predicated region
        $region17: #{tpu_custom_call.1} parent=11 // pred_check
          %p170 = pneg %p84
        $region18: #{tpu_custom_call.1} parent=11 // pred_check_branch
          %172 = sbr.rel (%p170) target = $region20
        $region19: #{tpu_custom_call.1} parent=11 // pred_region
          %174 = vsyncadd [#allocation3], 0
          %s175 = sshll.u32 %s2, 4
          %s176 = int_to_ptr.hbm [resolvable:$true] %s175
          %s177 = sshll.u32 [#allocation2], 4
          %s178 = int_to_ptr.vmem [resolvable:$true] %s177
          %183 = dma.hbm_to_vmem [thread:$0]  %s176, 256, %s178, [#allocation3], 128, 128, 8
        $region20: #{tpu_custom_call.1} parent=11 // pred_fallthru
          _
        // Predicated region
        $region21: #{tpu_custom_call.1} parent=11 // pred_check
          %p184 = pneg %p105
        $region22: #{tpu_custom_call.1} parent=11 // pred_check_branch
          %186 = sbr.rel (%p184) target = $region24
        $region23: #{tpu_custom_call.1} parent=11 // pred_region
          %188 = vsyncadd [#allocation6], 0
          %s189 = sshll.u32 %s3, 4
          %s190 = int_to_ptr.hbm [resolvable:$true] %s189
          %s191 = sshll.u32 [#allocation5], 4
          %s192 = int_to_ptr.vmem [resolvable:$true] %s191
          %197 = dma.hbm_to_vmem [thread:$0]  %s190, 256, %s192, [#allocation6], 128, 128, 8
        $region24: #{tpu_custom_call.1} parent=11 // pred_fallthru
          _
        // Predicated region
        $region25: #{tpu_custom_call.1} parent=11 // pred_check
          %p198 = pneg %p126
        $region26: #{tpu_custom_call.1} parent=11 // pred_check_branch
          %200 = sbr.rel (%p198) target = $region28
        $region27: #{tpu_custom_call.1} parent=11 // pred_region
          _
        $region28: #{tpu_custom_call.1} parent=11 // pred_fallthru
          _
      $region12: #{tpu_custom_call.1} parent=5 // pred_fallthru
        _
      %p201 = scmp.lt.s32.totalorder %s16, 2
      // Predicated region
      $region29: #{tpu_custom_call.1} parent=5 // pred_check
        %p202 = pneg %p201
      $region30: #{tpu_custom_call.1} parent=5 // pred_check_branch
        %204 = sbr.rel (%p202) target = $region32
      $region31: #{tpu_custom_call.1} parent=5 // pred_region
        // Predicated region
        $region33: #{tpu_custom_call.1} parent=31 // pred_check
          %p205 = pneg %p36
        $region34: #{tpu_custom_call.1} parent=31 // pred_check_branch
          %207 = sbr.rel (%p205) target = $region36
        $region35: #{tpu_custom_call.1} parent=31 // pred_region
          %p208 = scmp.lt.s32.totalorder %s16, 1
          %s209 = scalar_select %p208, %s16, 1
          %s210 = smul.addr %s209, 4
          %s211 = smul.addr %s210, 8
          %s212 = scalar_lea.vmem %s0, %s211
        $region36: #{tpu_custom_call.1} parent=31 // pred_fallthru
          _
      $region32: #{tpu_custom_call.1} parent=5 // pred_fallthru
        _
      %p213 = scmp.le.s32.totalorder 1, %s16
      %p214 = scmp.lt.s32.totalorder %s16, 3
      %p215 = pnand %p213, %p214
      %p216 = pneg %p215
      // Predicated region
      $region37: #{tpu_custom_call.1} parent=5 // pred_check
        _
      $region38: #{tpu_custom_call.1} parent=5 // pred_check_branch
        %218 = sbr.rel (%p215) target = $region40
      $region39: #{tpu_custom_call.1} parent=5 // pred_region
        %s219 = ssub.s32 %s16, 1
        // Predicated region
        $region41: #{tpu_custom_call.1} parent=39 // pred_check
          %p220 = pneg %p84
        $region42: #{tpu_custom_call.1} parent=39 // pred_check_branch
          %222 = sbr.rel (%p220) target = $region44
        $region43: #{tpu_custom_call.1} parent=39 // pred_region
          %224 = dma.done [#allocation3], 256
        $region44: #{tpu_custom_call.1} parent=39 // pred_fallthru
          _
        // Predicated region
        $region45: #{tpu_custom_call.1} parent=39 // pred_check
          %p225 = pneg %p105
        $region46: #{tpu_custom_call.1} parent=39 // pred_check_branch
          %227 = sbr.rel (%p225) target = $region48
        $region47: #{tpu_custom_call.1} parent=39 // pred_region
          %229 = dma.done [#allocation6], 256
        $region48: #{tpu_custom_call.1} parent=39 // pred_fallthru
          _
        %p230 = scmp.lt.s32.totalorder %s21, 1
        %s231 = scalar_select %p230, %s21, 1
        %s232 = smul.addr %s231, 4
        %s233 = smul.addr %s232, 8
        %s234 = scalar_lea.vmem %s0, %s233
        %p235 = pneg %p42
        %p236 = pneg %p39
        %p237 = pneg %p63
        %p238 = pneg %p60
        %p239 = pneg %p84
        %p240 = pneg %p81
        %p241 = pneg %p105
        %p242 = pneg %p102
        %p243 = pneg %p126
        %p244 = pneg %p123
        %p245 = pneg %p152
        %p246 = pneg %p149
        %s247 = sand.u32 %s139, 1
        %s248 = scalar_lea.sflag [#allocation4], %s247
        %s249 = sand.u32 %s139, 1
        %s250 = smul.addr %s249, 32
        %s251 = scalar_lea.vmem [#allocation7], %s250
        %p252 = scmp.lt.s32.totalorder %s21, 1
        %s253 = scalar_select %p252, %s21, 1
        %s254 = smul.addr %s253, 4
        %s255 = smul.addr %s254, 8
        %s256 = scalar_lea.vmem %s0, %s255
        %v257 = vld [vmem:[%s256] sm:$0xff]
        %v258 = vld [vmem:[%s256 + $0x8] sm:$0xff]
        %v259 = vld [vmem:[%s256 + $0x10] sm:$0xff]
        %v260 = vld [vmem:[%s256 + $0x18] sm:$0xff]
        %v261 = vlaneseq
        %v262 = vand.u32 %v261, 127
        %vm263 = vcmp.lt.s32.totalorder %v262, 16
        %v264 = vld [vmem:[%s1] sm:$0xff]
        %v265 = vld [vmem:[#allocation2] sm:$0xff]
        %v266 = vld [vmem:[#allocation5] sm:$0xff]
        %v267 = vld [vmem:[%s4] sm:$0xff]
        %v268 = vld [vmem:[%s4 + $0x8] sm:$0xff]
        %v269 = vld [vmem:[%s4 + $0x10] sm:$0xff]
        %v270 = vld [vmem:[%s4 + $0x18] sm:$0xff]
        %v271 = vtanh.pop %v257
        %v272 = vtanh.pop %v258
        %v273 = vtanh.pop %v259
        %v274 = vtanh.pop %v260
        %v275 = vsel %vm263, 1, 0
        %vm276 = vcmp.eq.s32.totalorder %v275, 1
        %v277 = vsel %vm276, %v271, 0.0
        %v278 = vsel %vm276, %v272, 0.0
        %v279 = vsel %vm276, %v273, 0.0
        %v280 = vsel %vm276, %v274, 0.0
        %vm281 = vcmask 261120
        %v283 = vsel %vm281, %v264, 0
        %285 = vmatpush.msra.mxu0 0.0
        %286 = vmatpush.msra.mxu0 0.0
        %287 = vmatpush.msra.mxu0 0.0
        %288 = vmatpush.msra.mxu0 0.0
        %289 = vmatpush.msra.mxu0 0.0
        %290 = vmatpush.msra.mxu0 0.0
        %291 = vmatpush.msra.mxu0 0.0
        %292 = vmatpush.msra.mxu0 0.0
        %293 = vmatpush.msra.mxu0 0.0
        %294 = vmatpush.msra.mxu0 0.0
        %295 = vmatpush.msra.mxu0 0.0
        %296 = vmatpush.msra.mxu0 0.0
        %297 = vmatpush.msra.mxu0 %v280
        %298 = vmatpush.msra.mxu0 %v279
        %299 = vmatpush.msra.mxu0 %v278
        %300 = vmatpush.msra.mxu0 %v277
        %301 = vmatmul.f32.gmra.mxu0 %v283
        %v302 = vpop.f32.mrf.mxu0
        %v303 = vadd.f32 0.0, %v302
        %304 = vdwg.mxu0
        %v306 = vsel %vm281, %v266, 0
        %308 = vmatpush.msra.mxu0 0.0
        %309 = vmatpush.msra.mxu0 0.0
        %310 = vmatpush.msra.mxu0 0.0
        %311 = vmatpush.msra.mxu0 0.0
        %312 = vmatpush.msra.mxu0 0.0
        %313 = vmatpush.msra.mxu0 0.0
        %314 = vmatpush.msra.mxu0 0.0
        %315 = vmatpush.msra.mxu0 0.0
        %316 = vmatpush.msra.mxu0 0.0
        %317 = vmatpush.msra.mxu0 0.0
        %318 = vmatpush.msra.mxu0 0.0
        %319 = vmatpush.msra.mxu0 0.0
        %320 = vmatpush.msra.mxu0 %v280
        %321 = vmatpush.msra.mxu0 %v279
        %322 = vmatpush.msra.mxu0 %v278
        %323 = vmatpush.msra.mxu0 %v277
        %324 = vmatmul.f32.gmra.mxu0 %v306
        %v325 = vpop.f32.mrf.mxu0
        %v326 = vadd.f32 0.0, %v325
        %327 = vdwg.mxu0
        %329 = vrot.lane.b32.xlu0 %v303, 1
        %v330 = vpop.permute.xlu0 %329
        %vm332 = vcmask 7168
        %v333 = vsel %vm332, 0.0, %v330
        %v335 = vsel %vm281, %v265, 0
        %337 = vmatpush.msra.mxu0 0.0
        %338 = vmatpush.msra.mxu0 0.0
        %339 = vmatpush.msra.mxu0 0.0
        %340 = vmatpush.msra.mxu0 0.0
        %341 = vmatpush.msra.mxu0 0.0
        %342 = vmatpush.msra.mxu0 0.0
        %343 = vmatpush.msra.mxu0 0.0
        %344 = vmatpush.msra.mxu0 0.0
        %345 = vmatpush.msra.mxu0 0.0
        %346 = vmatpush.msra.mxu0 0.0
        %347 = vmatpush.msra.mxu0 0.0
        %348 = vmatpush.msra.mxu0 0.0
        %349 = vmatpush.msra.mxu0 %v280
        %350 = vmatpush.msra.mxu0 %v279
        %351 = vmatpush.msra.mxu0 %v278
        %352 = vmatpush.msra.mxu0 %v277
        %353 = vmatmul.f32.gmra.mxu0 %v335
        %v354 = vpop.f32.mrf.mxu0
        %v355 = vadd.f32 %v333, %v354
        %356 = vdwg.mxu0
        %358 = vrot.lane.b32.xlu0 %v326, 127
        %v359 = vpop.permute.xlu0 %358
        %vm361 = vcmask 1039360
        %v362 = vsel %vm361, %v359, 0.0
        %v363 = vadd.f32 %v355, %v362
        %v364 = vtanh.pop %v363
        %vm365 = vcmask 64512
        %v367 = vsel %vm365, %v267, 0
        %v370 = vsel %vm365, %v268, 0
        %v373 = vsel %vm365, %v269, 0
        %v376 = vsel %vm365, %v270, 0
        %378 = vmatpush.msra.mxu0 0.0
        %379 = vmatpush.msra.mxu0 0.0
        %380 = vmatpush.msra.mxu0 0.0
        %381 = vmatpush.msra.mxu0 0.0
        %382 = vmatpush.msra.mxu0 0.0
        %383 = vmatpush.msra.mxu0 0.0
        %384 = vmatpush.msra.mxu0 0.0
        %385 = vmatpush.msra.mxu0 0.0
        %386 = vmatpush.msra.mxu0 0.0
        %387 = vmatpush.msra.mxu0 0.0
        %388 = vmatpush.msra.mxu0 0.0
        %389 = vmatpush.msra.mxu0 0.0
        %390 = vmatpush.msra.mxu0 0.0
        %391 = vmatpush.msra.mxu0 0.0
        %392 = vmatpush.msra.mxu0 0.0
        %393 = vmatpush.msra.mxu0 %v364
        %394 = vmatmul.f32.gmra.mxu0 %v367
        %v395 = vpop.f32.mrf.mxu0
        %v396 = vadd.f32 0.0, %v395
        %397 = vmatmul.f32.gmra.mxu0 %v370
        %v398 = vpop.f32.mrf.mxu0
        %v399 = vadd.f32 0.0, %v398
        %400 = vmatmul.f32.gmra.mxu0 %v373
        %v401 = vpop.f32.mrf.mxu0
        %v402 = vadd.f32 0.0, %v401
        %403 = vmatmul.f32.gmra.mxu0 %v376
        %v404 = vpop.f32.mrf.mxu0
        %v405 = vadd.f32 0.0, %v404
        %406 = vdwg.mxu0
        %v407 = vadd.f32 %v257, %v396
        %v408 = vadd.f32 %v258, %v399
        %v409 = vadd.f32 %v259, %v402
        %v410 = vadd.f32 %v260, %v405
        %s411 = scalar_lea.vmem %s1, 8
        %v412 = vld [vmem:[%s411] sm:$0xff]
        %s413 = scalar_lea.vmem [#allocation2], 8
        %v414 = vld [vmem:[%s413] sm:$0xff]
        %s415 = scalar_lea.vmem [#allocation5], 8
        %v416 = vld [vmem:[%s415] sm:$0xff]
        %s417 = scalar_lea.vmem %s4, 32
        %v418 = vld [vmem:[%s417] sm:$0xff]
        %v419 = vld [vmem:[%s417 + $0x8] sm:$0xff]
        %v420 = vld [vmem:[%s417 + $0x10] sm:$0xff]
        %v421 = vld [vmem:[%s417 + $0x18] sm:$0xff]
        %v422 = vtanh.pop %v407
        %v423 = vtanh.pop %v408
        %v424 = vtanh.pop %v409
        %v425 = vtanh.pop %v410
        %v426 = vsel %vm276, %v422, 0.0
        %v427 = vsel %vm276, %v423, 0.0
        %v428 = vsel %vm276, %v424, 0.0
        %v429 = vsel %vm276, %v425, 0.0
        %v431 = vsel %vm281, %v412, 0
        %433 = vmatpush.msra.mxu0 0.0
        %434 = vmatpush.msra.mxu0 0.0
        %435 = vmatpush.msra.mxu0 0.0
        %436 = vmatpush.msra.mxu0 0.0
        %437 = vmatpush.msra.mxu0 0.0
        %438 = vmatpush.msra.mxu0 0.0
        %439 = vmatpush.msra.mxu0 0.0
        %440 = vmatpush.msra.mxu0 0.0
        %441 = vmatpush.msra.mxu0 0.0
        %442 = vmatpush.msra.mxu0 0.0
        %443 = vmatpush.msra.mxu0 0.0
        %444 = vmatpush.msra.mxu0 0.0
        %445 = vmatpush.msra.mxu0 %v429
        %446 = vmatpush.msra.mxu0 %v428
        %447 = vmatpush.msra.mxu0 %v427
        %448 = vmatpush.msra.mxu0 %v426
        %449 = vmatmul.f32.gmra.mxu0 %v431
        %v450 = vpop.f32.mrf.mxu0
        %v451 = vadd.f32 0.0, %v450
        %452 = vdwg.mxu0
        %v454 = vsel %vm281, %v416, 0
        %456 = vmatpush.msra.mxu0 0.0
        %457 = vmatpush.msra.mxu0 0.0
        %458 = vmatpush.msra.mxu0 0.0
        %459 = vmatpush.msra.mxu0 0.0
        %460 = vmatpush.msra.mxu0 0.0
        %461 = vmatpush.msra.mxu0 0.0
        %462 = vmatpush.msra.mxu0 0.0
        %463 = vmatpush.msra.mxu0 0.0
        %464 = vmatpush.msra.mxu0 0.0
        %465 = vmatpush.msra.mxu0 0.0
        %466 = vmatpush.msra.mxu0 0.0
        %467 = vmatpush.msra.mxu0 0.0
        %468 = vmatpush.msra.mxu0 %v429
        %469 = vmatpush.msra.mxu0 %v428
        %470 = vmatpush.msra.mxu0 %v427
        %471 = vmatpush.msra.mxu0 %v426
        %472 = vmatmul.f32.gmra.mxu0 %v454
        %v473 = vpop.f32.mrf.mxu0
        %v474 = vadd.f32 0.0, %v473
        %475 = vdwg.mxu0
        %477 = vrot.lane.b32.xlu0 %v451, 1
        %v478 = vpop.permute.xlu0 %477
        %v480 = vsel %vm332, 0.0, %v478
        %v482 = vsel %vm281, %v414, 0
        %484 = vmatpush.msra.mxu0 0.0
        %485 = vmatpush.msra.mxu0 0.0
        %486 = vmatpush.msra.mxu0 0.0
        %487 = vmatpush.msra.mxu0 0.0
        %488 = vmatpush.msra.mxu0 0.0
        %489 = vmatpush.msra.mxu0 0.0
        %490 = vmatpush.msra.mxu0 0.0
        %491 = vmatpush.msra.mxu0 0.0
        %492 = vmatpush.msra.mxu0 0.0
        %493 = vmatpush.msra.mxu0 0.0
        %494 = vmatpush.msra.mxu0 0.0
        %495 = vmatpush.msra.mxu0 0.0
        %496 = vmatpush.msra.mxu0 %v429
        %497 = vmatpush.msra.mxu0 %v428
        %498 = vmatpush.msra.mxu0 %v427
        %499 = vmatpush.msra.mxu0 %v426
        %500 = vmatmul.f32.gmra.mxu0 %v482
        %v501 = vpop.f32.mrf.mxu0
        %v502 = vadd.f32 %v480, %v501
        %503 = vdwg.mxu0
        %505 = vrot.lane.b32.xlu0 %v474, 127
        %v506 = vpop.permute.xlu0 %505
        %v508 = vsel %vm361, %v506, 0.0
        %v509 = vadd.f32 %v502, %v508
        %v510 = vtanh.pop %v509
        %v512 = vsel %vm365, %v418, 0
        %v515 = vsel %vm365, %v419, 0
        %v518 = vsel %vm365, %v420, 0
        %v521 = vsel %vm365, %v421, 0
        %523 = vmatpush.msra.mxu0 0.0
        %524 = vmatpush.msra.mxu0 0.0
        %525 = vmatpush.msra.mxu0 0.0
        %526 = vmatpush.msra.mxu0 0.0
        %527 = vmatpush.msra.mxu0 0.0
        %528 = vmatpush.msra.mxu0 0.0
        %529 = vmatpush.msra.mxu0 0.0
        %530 = vmatpush.msra.mxu0 0.0
        %531 = vmatpush.msra.mxu0 0.0
        %532 = vmatpush.msra.mxu0 0.0
        %533 = vmatpush.msra.mxu0 0.0
        %534 = vmatpush.msra.mxu0 0.0
        %535 = vmatpush.msra.mxu0 0.0
        %536 = vmatpush.msra.mxu0 0.0
        %537 = vmatpush.msra.mxu0 0.0
        %538 = vmatpush.msra.mxu0 %v510
        %539 = vmatmul.f32.gmra.mxu0 %v512
        %v540 = vpop.f32.mrf.mxu0
        %v541 = vadd.f32 0.0, %v540
        %542 = vmatmul.f32.gmra.mxu0 %v515
        %v543 = vpop.f32.mrf.mxu0
        %v544 = vadd.f32 0.0, %v543
        %545 = vmatmul.f32.gmra.mxu0 %v518
        %v546 = vpop.f32.mrf.mxu0
        %v547 = vadd.f32 0.0, %v546
        %548 = vmatmul.f32.gmra.mxu0 %v521
        %v549 = vpop.f32.mrf.mxu0
        %v550 = vadd.f32 0.0, %v549
        %551 = vdwg.mxu0
        %v552 = vadd.f32 %v407, %v541
        %v553 = vadd.f32 %v408, %v544
        %v554 = vadd.f32 %v409, %v547
        %v555 = vadd.f32 %v410, %v550
        %v556 = vtanh.pop %v552
        %v557 = vtanh.pop %v553
        %v558 = vtanh.pop %v554
        %v559 = vtanh.pop %v555
        %560 = vst [vmem:[%s251] sm:$0xff] %v556
        %561 = vst [vmem:[%s251 + $0x8] sm:$0xff] %v557
        %562 = vst [vmem:[%s251 + $0x10] sm:$0xff] %v558
        %563 = vst [vmem:[%s251 + $0x18] sm:$0xff] %v559
        %s564 = sand.u32 %s139, 1
        %s565 = scalar_lea.sflag [#allocation4], %s564
        %s566 = sand.u32 %s139, 1
        %s567 = smul.addr %s566, 32
        %s568 = scalar_lea.vmem [#allocation7], %s567
        // Predicated region
        $region49: #{tpu_custom_call.1} parent=39 // pred_check
          %p569 = pneg %p149
        $region50: #{tpu_custom_call.1} parent=39 // pred_check_branch
          %571 = sbr.rel (%p569) target = $region52
        $region51: #{tpu_custom_call.1} parent=39 // pred_region
          %573 = vsyncadd %s565, 0
          %s574 = smul.addr %s21, 4
          %s575 = smul.addr %s574, 8
          %s576 = scalar_lea.hbm %s5, %s575
          %s577 = sshll.u32 %s568, 4
          %s578 = int_to_ptr.vmem [resolvable:$true] %s577
          %s579 = sshll.u32 %s576, 4
          %s580 = int_to_ptr.hbm [resolvable:$true] %s579
          %585 = dma.vmem_to_hbm [thread:$0]  %s578, 512, %s580, %s565, 128, 128, 8
        $region52: #{tpu_custom_call.1} parent=39 // pred_fallthru
          _
      $region40: #{tpu_custom_call.1} parent=5 // pred_fallthru
        _
      %p586 = scmp.le.s32.totalorder 2, %s16
      // Predicated region
      $region53: #{tpu_custom_call.1} parent=5 // pred_check
        %p587 = pneg %p586
      $region54: #{tpu_custom_call.1} parent=5 // pred_check_branch
        %589 = sbr.rel (%p587) target = $region56
      $region55: #{tpu_custom_call.1} parent=5 // pred_region
        %s590 = ssub.s32 %s16, 2
        // Predicated region
        $region57: #{tpu_custom_call.1} parent=55 // pred_check
          %p591 = pneg %p155
        $region58: #{tpu_custom_call.1} parent=55 // pred_check_branch
          %593 = sbr.rel (%p591) target = $region60
        $region59: #{tpu_custom_call.1} parent=55 // pred_region
          %s594 = sand.u32 %s140, 1
          %s595 = scalar_lea.sflag [#allocation4], %s594
          %s596 = sand.u32 %s140, 1
          %s597 = smul.addr %s596, 32
          %s598 = scalar_lea.vmem [#allocation7], %s597
          %600 = dma.done %s595, 512
        $region60: #{tpu_custom_call.1} parent=55 // pred_fallthru
          _
      $region56: #{tpu_custom_call.1} parent=5 // pred_fallthru
        _
    $region6: #{tpu_custom_call.1} parent=1 // loop_footer
      %s20 = sadd.s32 1, %s16
    $region7: #{tpu_custom_call.1} parent=1 // loop_footer_branch
      %15 = sbr.rel target = $region3
    $region8: #{tpu_custom_call.1} parent=1 // loop_exit
      _
    %601 = vsyncpa [#allocation3], 1
    %s602 = scalar_lea.sflag [#allocation3], 1
    %603 = vsyncpa %s602, 1
    %604 = vsyncpa [#allocation6], 1
    %605 = vsyncpa [#allocation4], 1
    %s606 = scalar_lea.sflag [#allocation4], 1
    %607 = vsyncpa %s606, 1

</llo_original>
